<compile_context>
chip_gen: v7x
topology: tpu7x:2x2x1
jax: 0.10.0
libtpu: 0.0.40
codegen_flags: <defaults>
</compile_context>

<pallas_src>
import jax
import jax.numpy as jnp
from jax.experimental import pallas as pl
from jax.experimental.pallas import tpu as pltpu


# ---------------------------------------------------------------------------
# Kernels
# ---------------------------------------------------------------------------
def _transpose_tile_kernel(x_ref, o_ref):
    # x_ref: (TL, TA) VMEM tile; o_ref: (TA, TL) VMEM tile (batch squeezed).
    # Pure XLU tile transpose; hidden under the HBM stream.
    o_ref[...] = x_ref[...].T


def _transpose_fold_kernel(x_ref, o_ref):
    # x_ref: (TB, L, A); o_ref: (TB, A*L) -- lane-dense flattened output so
    # stores are unmasked, full-lane vst's even when L < 128.
    tb, l, a = x_ref.shape
    o_ref[...] = jnp.swapaxes(x_ref[...], 1, 2).reshape(tb, a * l)


# ---------------------------------------------------------------------------
# Tile-size selection (byte based, 128-aligned, ragged last blocks allowed)
# ---------------------------------------------------------------------------
_TILE_BYTES = 1 << 20  # ~1 MiB per tile: (in+out) x double-buffer ~= 4 MiB.
_VMEM_LIMIT = 32 * 1024 * 1024  # safe on v5e/v6e (128 MiB) and v7x (64 MiB).


def _pick_tile(dim: int, target: int) -> int:
    """Tile for one of the transposed axes.

    Each axis is a lane dim in one BlockSpec and a sublane dim in the other,
    so a tile must be a 128-multiple (then ragged last blocks are legal and
    get padded/masked) or span the full axis (always legal).
    """
    if dim <= target:
        return dim                       # full extent, no ragged blocks
    return max(128, (target // 128) * 128)  # 128-aligned; ragged last block OK


def _tile_sizes(L: int, A: int, itemsize: int):
    """Pick (tl, ta) so the tile streams ~_TILE_BYTES regardless of dtype."""
    budget = max(_TILE_BYTES // itemsize, 8 * 128)   # elements per tile
    base = 512                                        # ~85% roofline class
    tl = _pick_tile(L, base)
    ta = _pick_tile(A, base)
    # Spend leftover byte budget (narrow dtypes / one small axis) on the other
    # axis, keeping 128-alignment so ragged last blocks stay legal.
    ta = _pick_tile(A, max(base, (budget // max(tl, 1) // 128) * 128))
    tl = _pick_tile(L, max(base, (budget // max(ta, 1) // 128) * 128))
    return tl, ta


# ---------------------------------------------------------------------------
# Wrapper
# ---------------------------------------------------------------------------
def transpose_1_2(x):
    """Pallas equivalent of torch.transpose(x, 1, 2) for a 3-D array (N, L, A)."""
    N, L, A = x.shape
    itemsize = jnp.dtype(x.dtype).itemsize
    cost = pl.CostEstimate(
        flops=0, transcendentals=0, bytes_accessed=2 * N * L * A * itemsize
    )

    slab_bytes = L * A * itemsize
    tb_fit = _TILE_BYTES // max(slab_bytes, 1)   # batch slabs per ~1 MiB tile

    # ---------------- Folded, lane-dense-output path (small slabs) ----------
    # Legal tb values for the flattened (N, A*L) output block are "== N" or
    # "multiple of 8" (second-minor block-dim rule), so fold only when one of
    # those fits under the byte budget.
    if slab_bytes <= _TILE_BYTES and (tb_fit >= N or tb_fit >= 8):
        if tb_fit >= N:
            tb = N
            if N > 8:
                # Split into >= 2 grid steps (8-aligned) so v7x's second
                # TensorCore gets work; for N <= 8 a legal split does not
                # exist and the input is tiny enough not to matter.
                half = ((pl.cdiv(N, 2) + 7) // 8) * 8
                if half < N:
                    tb = half
        else:
            tb = (tb_fit // 8) * 8       # 8-aligned; ragged last batch block

        grid = (pl.cdiv(N, tb),)
        out_flat = pl.pallas_call(
            _transpose_fold_kernel,
            out_shape=jax.ShapeDtypeStruct((N, A * L), x.dtype),
            grid_spec=pltpu.PrefetchScalarGridSpec(
                num_scalar_prefetch=0,
                grid=grid,
                in_specs=[pl.BlockSpec((tb, L, A), lambda b: (b, 0, 0))],
                out_specs=pl.BlockSpec((tb, A * L), lambda b: (b, 0)),
            ),
            compiler_params=pltpu.CompilerParams(
                dimension_semantics=("parallel",),
                vmem_limit_bytes=_VMEM_LIMIT,
            ),
            cost_estimate=cost,
        )(x)
        # Free, contiguous reshape back to the (N, A, L) the module returns.
        return out_flat.reshape(N, A, L)

    # ---------------- General tiled path (large per-batch slabs) ------------
    tl, ta = _tile_sizes(L, A, itemsize)
    grid = (N, pl.cdiv(L, tl), pl.cdiv(A, ta))
    return pl.pallas_call(
        _transpose_tile_kernel,
        out_shape=jax.ShapeDtypeStruct((N, A, L), x.dtype),
        grid_spec=pltpu.PrefetchScalarGridSpec(
            num_scalar_prefetch=0,
            grid=grid,
            in_specs=[
                pl.BlockSpec((pl.Squeezed(), tl, ta), lambda b, l, a: (b, l, a))
            ],
            out_specs=pl.BlockSpec(
                (pl.Squeezed(), ta, tl), lambda b, l, a: (b, a, l)
            ),
        ),
        compiler_params=pltpu.CompilerParams(
            # Pure data movement, no cross-step dependencies: all axes
            # parallel so v7x's two TensorCores split the grid (no-op on
            # single-core v5e/v6e).
            dimension_semantics=("parallel", "parallel", "parallel"),
            vmem_limit_bytes=_VMEM_LIMIT,
        ),
        cost_estimate=cost,
    )(x)


# ---------------------------------------------------------------------------
# Demo / correctness checks
# ---------------------------------------------------------------------------
if __name__ == "__main__":
    key = jax.random.PRNGKey(0)

    # Primary small shape implied by the module: (batch=2, seq=8, hidden=32).
    # Tiny slab -> folded path with lane-dense flattened output stores.
    N, L, A = 2, 8, 32
    x_small = jax.random.normal(key, (N, L, A), dtype=jnp.float32)
    out_small = jax.block_until_ready(transpose_1_2(x_small))
    ref_small = jnp.swapaxes(x_small, 1, 2)
    assert out_small.shape == (N, A, L), out_small.shape
    assert out_small.dtype == x_small.dtype, out_small.dtype
    assert jnp.array_equal(out_small, ref_small), "mismatch (small shape)"

    # Folded path with a ragged last batch block (N not a multiple of tb).
    x_odd = jax.random.normal(jax.random.PRNGKey(0), (11, 8, 32), jnp.float32)
    out_odd = jax.block_until_ready(transpose_1_2(x_odd))
    assert jnp.array_equal(out_odd, jnp.swapaxes(x_odd, 1, 2)), "mismatch (odd N)"

    # General tiled path with ragged 128-aligned tiles on BOTH transposed axes
    # (L % tl != 0 and A % ta != 0) -> exercises partial-block write masking.
    x_big = jax.random.normal(jax.random.PRNGKey(0), (1, 1000, 640), jnp.float32)
    out_big = jax.block_until_ready(transpose_1_2(x_big))
    assert out_big.shape == (1, 640, 1000), out_big.shape
    assert jnp.array_equal(out_big, jnp.swapaxes(x_big, 1, 2)), "mismatch (ragged tiles)"

    print("KERNEL_OK")
</pallas_src>

<mosaic_0001>
module attributes {stable_mosaic.version = 11 : i64} {
  func.func @_transpose_fold_kernel(%arg0: i32, %arg1: memref<2x8x32xf32, #tpu.memory_space<vmem>>, %arg2: memref<2x256xf32, #tpu.memory_space<vmem>>) attributes {dimension_semantics = [#tpu.dimension_semantics<parallel>], iteration_bounds = array<i64: 1>, scalar_prefetch = 0 : i64, scratch_operands = 0 : i64, tpu.core_type = #tpu.core_type<tc>, window_params = [{transform_indices = @transform_0, window_bounds = array<i64: 2, 8, 32>}, {transform_indices = @transform_1, window_bounds = array<i64: 2, 256>}]} {
    %c0 = arith.constant 0 : index
    %c0_0 = arith.constant 0 : index
    %c0_1 = arith.constant 0 : index
    %0 = vector.load %arg1[%c0, %c0_0, %c0_1] : memref<2x8x32xf32, #tpu.memory_space<vmem>>, vector<2x8x32xf32>
    %1 = tpu.transpose %0, [0, 2, 1] : vector<2x8x32xf32> -> vector<2x32x8xf32>
    %2 = vector.shape_cast %1 : vector<2x32x8xf32> to vector<2x256xf32>
    %c0_2 = arith.constant 0 : index
    %c0_3 = arith.constant 0 : index
    %3 = vector.load %arg2[%c0_2, %c0_3] : memref<2x256xf32, #tpu.memory_space<vmem>>, vector<2x256xf32>
    tpu.vector_store %arg2[%c0_2, %c0_3], %2 {strides = array<i32>} : memref<2x256xf32, #tpu.memory_space<vmem>>, vector<2x256xf32>,
    return
  }
  func.func @transform_0(%arg0: i32) -> (i32, i32, i32) {
    %c0_i32 = arith.constant 0 : i32
    %c0_i32_0 = arith.constant 0 : i32
    %c0_i32_1 = arith.constant 0 : i32
    return %arg0, %c0_i32, %c0_i32_0 : i32, i32, i32
  }
  func.func @transform_1(%arg0: i32) -> (i32, i32) {
    %c0_i32 = arith.constant 0 : i32
    %c0_i32_0 = arith.constant 0 : i32
    return %arg0, %c0_i32 : i32, i32
  }
}

</mosaic_0001>

<llo_original>
// kernel: tpu_custom_call.1
$region0: #{tpu_custom_call.1}
  #allocation0 [shape = 'u32[]', space=smem, size = 0x4, offset = 0x4, fixed_abs, tag = 'smem constant byte address 0x4 - core index']
  #allocation1 [shape = 'u32[144,128]{1,0:T(1,128)}', space=vmem, size = 0x12000, scoped, tag = 'internal scratch']
  %s0 = inlined_call_operand.hbm [shape: f32[2,8,32], index: 0, kind: input, shape index: {}]
  %s1 = inlined_call_operand.hbm [shape: f32[2,256], index: 1, kind: output, shape index: {}]
  %s2 = sld [smem:[#allocation0]]
  $region18: #{tpu_custom_call.1} parent=0
    _
  %s4 = ssub.s32 1, %s2
  %s5 = scalar_select 0, %s4, %s2
  $region1: #{tpu_custom_call.1} parent=0
    #allocation2 [shape = 'u8[8192]{0}', space=vmem, size = 0x2000, scoped, tag = 'input window, operand 0, single buffered']
    #allocation3 [shape = 's32[1]{0}', space=sflag, size = 0x4, scoped, tag = 'scoped memory for tpu_custom_call.1']
    #allocation4 [shape = 's32[1]{0}', space=sflag, size = 0x4, scoped, tag = 'scoped memory for tpu_custom_call.1']
    #allocation5 [shape = 'u8[2048]{0}', space=vmem, size = 0x800, scoped, tag = 'output window, operand 0, single buffered']
    %6 = vsyncpa [#allocation3], 0
    %7 = vsyncpa [#allocation4], 0
    // Predicated region
    $region2: #{tpu_custom_call.1} parent=1 // pred_check
      _
    $region3: #{tpu_custom_call.1} parent=1 // pred_check_branch
      %9 = sbr.rel (0) target = $region5
    $region4: #{tpu_custom_call.1} parent=1 // pred_region
      %s11 = ssub.s32 256, 256
      %12 = vsyncadd [#allocation3], %s11
      %s13 = sshll.u32 [#allocation2], 4
      %s14 = int_to_ptr.vmem [resolvable:$true] %s13
      %19 = dma.hbm_to_vmem [thread:$0]  %s0, 256, %s14, [#allocation3], 128, 128, 8
    $region5: #{tpu_custom_call.1} parent=1 // pred_fallthru
      _
    // Predicated region
    $region6: #{tpu_custom_call.1} parent=1 // pred_check
      _
    $region7: #{tpu_custom_call.1} parent=1 // pred_check_branch
      %21 = sbr.rel (0) target = $region9
    $region8: #{tpu_custom_call.1} parent=1 // pred_region
      %22 = dma.done [#allocation3], 256
    $region9: #{tpu_custom_call.1} parent=1 // pred_fallthru
      _
    %v23 = vld [vmem:[#allocation2] sm:$0xff]
    %v24 = vld [vmem:[#allocation2 + $0x8] sm:$0xff]
    %25 = vxpose.xlu0.b32.start [1/16] %v23, 128
    %26 = vxpose.xlu0.b32.cont [2/16] 0.0, 128
    %27 = vxpose.xlu0.b32.cont [3/16] 0.0, 128
    %28 = vxpose.xlu0.b32.cont [4/16] 0.0, 128
    %29 = vxpose.xlu0.b32.cont [5/16] 0.0, 128
    %30 = vxpose.xlu0.b32.cont [6/16] 0.0, 128
    %31 = vxpose.xlu0.b32.cont [7/16] 0.0, 128
    %32 = vxpose.xlu0.b32.cont [8/16] 0.0, 128
    %33 = vxpose.xlu0.b32.cont [9/16] 0.0, 128
    %34 = vxpose.xlu0.b32.cont [10/16] 0.0, 128
    %35 = vxpose.xlu0.b32.cont [11/16] 0.0, 128
    %36 = vxpose.xlu0.b32.cont [12/16] 0.0, 128
    %37 = vxpose.xlu0.b32.cont [13/16] 0.0, 128
    %38 = vxpose.xlu0.b32.cont [14/16] 0.0, 128
    %39 = vxpose.xlu0.b32.cont [15/16] 0.0, 128
    %40 = vxpose.xlu0.b32.end [16/16] 0.0, 128
    %v41 = vpop.trf.xlu0
    %v42 = vpop.trf.xlu0
    %v43 = vpop.trf.xlu0
    %v44 = vpop.trf.xlu0
    %v45 = vpop.trf.xlu0
    %v46 = vpop.trf.xlu0
    %v47 = vpop.trf.xlu0
    %v48 = vpop.trf.xlu0
    %v49 = vpop.trf.xlu0
    %v50 = vpop.trf.xlu0
    %v51 = vpop.trf.xlu0
    %v52 = vpop.trf.xlu0
    %v53 = vpop.trf.xlu0
    %v54 = vpop.trf.xlu0
    %v55 = vpop.trf.xlu0
    %v56 = vpop.trf.xlu0
    %57 = vxpose.xlu0.b32.start [1/16] %v24, 128
    %58 = vxpose.xlu0.b32.cont [2/16] 0.0, 128
    %59 = vxpose.xlu0.b32.cont [3/16] 0.0, 128
    %60 = vxpose.xlu0.b32.cont [4/16] 0.0, 128
    %61 = vxpose.xlu0.b32.cont [5/16] 0.0, 128
    %62 = vxpose.xlu0.b32.cont [6/16] 0.0, 128
    %63 = vxpose.xlu0.b32.cont [7/16] 0.0, 128
    %64 = vxpose.xlu0.b32.cont [8/16] 0.0, 128
    %65 = vxpose.xlu0.b32.cont [9/16] 0.0, 128
    %66 = vxpose.xlu0.b32.cont [10/16] 0.0, 128
    %67 = vxpose.xlu0.b32.cont [11/16] 0.0, 128
    %68 = vxpose.xlu0.b32.cont [12/16] 0.0, 128
    %69 = vxpose.xlu0.b32.cont [13/16] 0.0, 128
    %70 = vxpose.xlu0.b32.cont [14/16] 0.0, 128
    %71 = vxpose.xlu0.b32.cont [15/16] 0.0, 128
    %72 = vxpose.xlu0.b32.end [16/16] 0.0, 128
    %v73 = vpop.trf.xlu0
    %v74 = vpop.trf.xlu0
    %v75 = vpop.trf.xlu0
    %v76 = vpop.trf.xlu0
    %v77 = vpop.trf.xlu0
    %v78 = vpop.trf.xlu0
    %v79 = vpop.trf.xlu0
    %v80 = vpop.trf.xlu0
    %v81 = vpop.trf.xlu0
    %v82 = vpop.trf.xlu0
    %v83 = vpop.trf.xlu0
    %v84 = vpop.trf.xlu0
    %v85 = vpop.trf.xlu0
    %v86 = vpop.trf.xlu0
    %v87 = vpop.trf.xlu0
    %v88 = vpop.trf.xlu0
    %v89 = vcombine.high %v41, 0.0
    %v91 = vunpack.c.l.s4 1983009808
    %v92 = vunpack.c.0.s8 %v91
    %v93 = vlaneseq
    %v94 = vshrl.u32 %v93, 7
    %v95 = vsub.s32 %v92, %v94
    %v96 = vrot.slane %v41, %v95
    %v98 = vunpack.c.l.s4 1983009808
    %v99 = vunpack.c.0.s8 %v98
    %v100 = vlaneseq
    %v101 = vshrl.u32 %v100, 7
    %v102 = vsub.s32 %v99, %v101
    %v103 = vrot.slane %v89, %v102
    %v104 = vcombine.high %v73, 0.0
    %v106 = vunpack.c.l.s4 1983009808
    %v107 = vunpack.c.0.s8 %v106
    %v108 = vlaneseq
    %v109 = vshrl.u32 %v108, 7
    %v110 = vsub.s32 %v107, %v109
    %v111 = vrot.slane %v73, %v110
    %v113 = vunpack.c.l.s4 1983009808
    %v114 = vunpack.c.0.s8 %v113
    %v115 = vlaneseq
    %v116 = vshrl.u32 %v115, 7
    %v117 = vsub.s32 %v114, %v116
    %v118 = vrot.slane %v104, %v117
    %v119 = vcombine.low %v96, %v111
    %v120 = vcombine.high %v96, %v111
    %v122 = vunpack.c.l.s4 1934713408
    %v123 = vunpack.c.0.s8 %v122
    %v124 = vlaneseq
    %v125 = vshrl.u32 %v124, 7
    %v126 = vsub.s32 %v123, %v125
    %v127 = vrot.slane %v119, %v126
    %v129 = vunpack.c.l.s4 1934713408
    %v130 = vunpack.c.0.s8 %v129
    %v131 = vlaneseq
    %v132 = vshrl.u32 %v131, 7
    %v133 = vsub.s32 %v130, %v132
    %v134 = vrot.slane %v120, %v133
    %v135 = vcombine.low %v103, %v118
    %v136 = vcombine.high %v103, %v118
    %v138 = vunpack.c.l.s4 1934713408
    %v139 = vunpack.c.0.s8 %v138
    %v140 = vlaneseq
    %v141 = vshrl.u32 %v140, 7
    %v142 = vsub.s32 %v139, %v141
    %v143 = vrot.slane %v135, %v142
    %v145 = vunpack.c.l.s4 1934713408
    %v146 = vunpack.c.0.s8 %v145
    %v147 = vlaneseq
    %v148 = vshrl.u32 %v147, 7
    %v149 = vsub.s32 %v146, %v148
    %v150 = vrot.slane %v136, %v149
    %v151 = vcombine.high %v127, 0.0
    %v152 = vcombine.high %v134, 0.0
    %v153 = vcombine.high %v143, 0.0
    %v154 = vcombine.high %v150, 0.0
    %v155 = vcombine.high %v42, 0.0
    %v157 = vunpack.c.l.s4 1983009808
    %v158 = vunpack.c.0.s8 %v157
    %v159 = vlaneseq
    %v160 = vshrl.u32 %v159, 7
    %v161 = vsub.s32 %v158, %v160
    %v162 = vrot.slane %v42, %v161
    %v164 = vunpack.c.l.s4 1983009808
    %v165 = vunpack.c.0.s8 %v164
    %v166 = vlaneseq
    %v167 = vshrl.u32 %v166, 7
    %v168 = vsub.s32 %v165, %v167
    %v169 = vrot.slane %v155, %v168
    %v170 = vcombine.high %v74, 0.0
    %v172 = vunpack.c.l.s4 1983009808
    %v173 = vunpack.c.0.s8 %v172
    %v174 = vlaneseq
    %v175 = vshrl.u32 %v174, 7
    %v176 = vsub.s32 %v173, %v175
    %v177 = vrot.slane %v74, %v176
    %v179 = vunpack.c.l.s4 1983009808
    %v180 = vunpack.c.0.s8 %v179
    %v181 = vlaneseq
    %v182 = vshrl.u32 %v181, 7
    %v183 = vsub.s32 %v180, %v182
    %v184 = vrot.slane %v170, %v183
    %v185 = vcombine.low %v162, %v177
    %v186 = vcombine.high %v162, %v177
    %v188 = vunpack.c.l.s4 1934713408
    %v189 = vunpack.c.0.s8 %v188
    %v190 = vlaneseq
    %v191 = vshrl.u32 %v190, 7
    %v192 = vsub.s32 %v189, %v191
    %v193 = vrot.slane %v185, %v192
    %v195 = vunpack.c.l.s4 1934713408
    %v196 = vunpack.c.0.s8 %v195
    %v197 = vlaneseq
    %v198 = vshrl.u32 %v197, 7
    %v199 = vsub.s32 %v196, %v198
    %v200 = vrot.slane %v186, %v199
    %v201 = vcombine.low %v169, %v184
    %v202 = vcombine.high %v169, %v184
    %v204 = vunpack.c.l.s4 1934713408
    %v205 = vunpack.c.0.s8 %v204
    %v206 = vlaneseq
    %v207 = vshrl.u32 %v206, 7
    %v208 = vsub.s32 %v205, %v207
    %v209 = vrot.slane %v201, %v208
    %v211 = vunpack.c.l.s4 1934713408
    %v212 = vunpack.c.0.s8 %v211
    %v213 = vlaneseq
    %v214 = vshrl.u32 %v213, 7
    %v215 = vsub.s32 %v212, %v214
    %v216 = vrot.slane %v202, %v215
    %v217 = vcombine.high %v193, 0.0
    %v218 = vcombine.high %v200, 0.0
    %v219 = vcombine.high %v209, 0.0
    %v220 = vcombine.high %v216, 0.0
    %v221 = vcombine.high %v43, 0.0
    %v223 = vunpack.c.l.s4 1983009808
    %v224 = vunpack.c.0.s8 %v223
    %v225 = vlaneseq
    %v226 = vshrl.u32 %v225, 7
    %v227 = vsub.s32 %v224, %v226
    %v228 = vrot.slane %v43, %v227
    %v230 = vunpack.c.l.s4 1983009808
    %v231 = vunpack.c.0.s8 %v230
    %v232 = vlaneseq
    %v233 = vshrl.u32 %v232, 7
    %v234 = vsub.s32 %v231, %v233
    %v235 = vrot.slane %v221, %v234
    %v236 = vcombine.high %v75, 0.0
    %v238 = vunpack.c.l.s4 1983009808
    %v239 = vunpack.c.0.s8 %v238
    %v240 = vlaneseq
    %v241 = vshrl.u32 %v240, 7
    %v242 = vsub.s32 %v239, %v241
    %v243 = vrot.slane %v75, %v242
    %v245 = vunpack.c.l.s4 1983009808
    %v246 = vunpack.c.0.s8 %v245
    %v247 = vlaneseq
    %v248 = vshrl.u32 %v247, 7
    %v249 = vsub.s32 %v246, %v248
    %v250 = vrot.slane %v236, %v249
    %v251 = vcombine.low %v228, %v243
    %v252 = vcombine.high %v228, %v243
    %v254 = vunpack.c.l.s4 1934713408
    %v255 = vunpack.c.0.s8 %v254
    %v256 = vlaneseq
    %v257 = vshrl.u32 %v256, 7
    %v258 = vsub.s32 %v255, %v257
    %v259 = vrot.slane %v251, %v258
    %v261 = vunpack.c.l.s4 1934713408
    %v262 = vunpack.c.0.s8 %v261
    %v263 = vlaneseq
    %v264 = vshrl.u32 %v263, 7
    %v265 = vsub.s32 %v262, %v264
    %v266 = vrot.slane %v252, %v265
    %v267 = vcombine.low %v235, %v250
    %v268 = vcombine.high %v235, %v250
    %v270 = vunpack.c.l.s4 1934713408
    %v271 = vunpack.c.0.s8 %v270
    %v272 = vlaneseq
    %v273 = vshrl.u32 %v272, 7
    %v274 = vsub.s32 %v271, %v273
    %v275 = vrot.slane %v267, %v274
    %v277 = vunpack.c.l.s4 1934713408
    %v278 = vunpack.c.0.s8 %v277
    %v279 = vlaneseq
    %v280 = vshrl.u32 %v279, 7
    %v281 = vsub.s32 %v278, %v280
    %v282 = vrot.slane %v268, %v281
    %v283 = vcombine.high %v259, 0.0
    %v284 = vcombine.high %v266, 0.0
    %v285 = vcombine.high %v275, 0.0
    %v286 = vcombine.high %v282, 0.0
    %v287 = vcombine.high %v44, 0.0
    %v289 = vunpack.c.l.s4 1983009808
    %v290 = vunpack.c.0.s8 %v289
    %v291 = vlaneseq
    %v292 = vshrl.u32 %v291, 7
    %v293 = vsub.s32 %v290, %v292
    %v294 = vrot.slane %v44, %v293
    %v296 = vunpack.c.l.s4 1983009808
    %v297 = vunpack.c.0.s8 %v296
    %v298 = vlaneseq
    %v299 = vshrl.u32 %v298, 7
    %v300 = vsub.s32 %v297, %v299
    %v301 = vrot.slane %v287, %v300
    %v302 = vcombine.high %v76, 0.0
    %v304 = vunpack.c.l.s4 1983009808
    %v305 = vunpack.c.0.s8 %v304
    %v306 = vlaneseq
    %v307 = vshrl.u32 %v306, 7
    %v308 = vsub.s32 %v305, %v307
    %v309 = vrot.slane %v76, %v308
    %v311 = vunpack.c.l.s4 1983009808
    %v312 = vunpack.c.0.s8 %v311
    %v313 = vlaneseq
    %v314 = vshrl.u32 %v313, 7
    %v315 = vsub.s32 %v312, %v314
    %v316 = vrot.slane %v302, %v315
    %v317 = vcombine.low %v294, %v309
    %v318 = vcombine.high %v294, %v309
    %v320 = vunpack.c.l.s4 1934713408
    %v321 = vunpack.c.0.s8 %v320
    %v322 = vlaneseq
    %v323 = vshrl.u32 %v322, 7
    %v324 = vsub.s32 %v321, %v323
    %v325 = vrot.slane %v317, %v324
    %v327 = vunpack.c.l.s4 1934713408
    %v328 = vunpack.c.0.s8 %v327
    %v329 = vlaneseq
    %v330 = vshrl.u32 %v329, 7
    %v331 = vsub.s32 %v328, %v330
    %v332 = vrot.slane %v318, %v331
    %v333 = vcombine.low %v301, %v316
    %v334 = vcombine.high %v301, %v316
    %v336 = vunpack.c.l.s4 1934713408
    %v337 = vunpack.c.0.s8 %v336
    %v338 = vlaneseq
    %v339 = vshrl.u32 %v338, 7
    %v340 = vsub.s32 %v337, %v339
    %v341 = vrot.slane %v333, %v340
    %v343 = vunpack.c.l.s4 1934713408
    %v344 = vunpack.c.0.s8 %v343
    %v345 = vlaneseq
    %v346 = vshrl.u32 %v345, 7
    %v347 = vsub.s32 %v344, %v346
    %v348 = vrot.slane %v334, %v347
    %v349 = vcombine.high %v325, 0.0
    %v350 = vcombine.high %v332, 0.0
    %v351 = vcombine.high %v341, 0.0
    %v352 = vcombine.high %v348, 0.0
    %354 = vrot.lane.b32.xlu0 %v151, 8
    %v355 = vpop.permute.xlu0 %354
    %358 = vrot.lane.b32.xlu0 %v134, 16
    %v359 = vpop.permute.xlu0 %358
    %362 = vrot.lane.b32.xlu0 %v152, 24
    %v363 = vpop.permute.xlu0 %362
    %366 = vrot.lane.b32.xlu0 %v143, 32
    %v367 = vpop.permute.xlu0 %366
    %370 = vrot.lane.b32.xlu0 %v153, 40
    %v371 = vpop.permute.xlu0 %370
    %374 = vrot.lane.b32.xlu0 %v150, 48
    %v375 = vpop.permute.xlu0 %374
    %378 = vrot.lane.b32.xlu0 %v154, 56
    %v379 = vpop.permute.xlu0 %378
    %382 = vrot.lane.b32.xlu0 %v193, 64
    %v383 = vpop.permute.xlu0 %382
    %386 = vrot.lane.b32.xlu0 %v217, 72
    %v387 = vpop.permute.xlu0 %386
    %390 = vrot.lane.b32.xlu0 %v200, 80
    %v391 = vpop.permute.xlu0 %390
    %394 = vrot.lane.b32.xlu0 %v218, 88
    %v395 = vpop.permute.xlu0 %394
    %398 = vrot.lane.b32.xlu0 %v209, 96
    %v399 = vpop.permute.xlu0 %398
    %402 = vrot.lane.b32.xlu0 %v219, 104
    %v403 = vpop.permute.xlu0 %402
    %406 = vrot.lane.b32.xlu0 %v216, 112
    %v407 = vpop.permute.xlu0 %406
    %410 = vrot.lane.b32.xlu0 %v220, 120
    %v411 = vpop.permute.xlu0 %410
    %414 = vrot.lane.b32.xlu0 %v283, 8
    %v415 = vpop.permute.xlu0 %414
    %418 = vrot.lane.b32.xlu0 %v266, 16
    %v419 = vpop.permute.xlu0 %418
    %422 = vrot.lane.b32.xlu0 %v284, 24
    %v423 = vpop.permute.xlu0 %422
    %426 = vrot.lane.b32.xlu0 %v275, 32
    %v427 = vpop.permute.xlu0 %426
    %430 = vrot.lane.b32.xlu0 %v285, 40
    %v431 = vpop.permute.xlu0 %430
    %434 = vrot.lane.b32.xlu0 %v282, 48
    %v435 = vpop.permute.xlu0 %434
    %438 = vrot.lane.b32.xlu0 %v286, 56
    %v439 = vpop.permute.xlu0 %438
    %442 = vrot.lane.b32.xlu0 %v325, 64
    %v443 = vpop.permute.xlu0 %442
    %446 = vrot.lane.b32.xlu0 %v349, 72
    %v447 = vpop.permute.xlu0 %446
    %450 = vrot.lane.b32.xlu0 %v332, 80
    %v451 = vpop.permute.xlu0 %450
    %454 = vrot.lane.b32.xlu0 %v350, 88
    %v455 = vpop.permute.xlu0 %454
    %458 = vrot.lane.b32.xlu0 %v341, 96
    %v459 = vpop.permute.xlu0 %458
    %462 = vrot.lane.b32.xlu0 %v351, 104
    %v463 = vpop.permute.xlu0 %462
    %466 = vrot.lane.b32.xlu0 %v348, 112
    %v467 = vpop.permute.xlu0 %466
    %470 = vrot.lane.b32.xlu0 %v352, 120
    %v471 = vpop.permute.xlu0 %470
    %vm473 = vcmask 64512
    %v474 = vsel %vm473, %v127, %v355
    %vm475 = vcmask 130048
    %v476 = vsel %vm475, %v474, %v359
    %vm477 = vcmask 195584
    %v478 = vsel %vm477, %v476, %v363
    %vm479 = vcmask 261120
    %v480 = vsel %vm479, %v478, %v367
    %vm481 = vcmask 326656
    %v482 = vsel %vm481, %v480, %v371
    %vm483 = vcmask 392192
    %v484 = vsel %vm483, %v482, %v375
    %vm485 = vcmask 457728
    %v486 = vsel %vm485, %v484, %v379
    %vm487 = vcmask 523264
    %v488 = vsel %vm487, %v486, %v383
    %vm489 = vcmask 588800
    %v490 = vsel %vm489, %v488, %v387
    %vm491 = vcmask 654336
    %v492 = vsel %vm491, %v490, %v391
    %vm493 = vcmask 719872
    %v494 = vsel %vm493, %v492, %v395
    %vm495 = vcmask 785408
    %v496 = vsel %vm495, %v494, %v399
    %vm497 = vcmask 850944
    %v498 = vsel %vm497, %v496, %v403
    %vm499 = vcmask 916480
    %v500 = vsel %vm499, %v498, %v407
    %vm501 = vcmask 982016
    %v502 = vsel %vm501, %v500, %v411
    %v503 = vsel %vm473, %v259, %v415
    %v504 = vsel %vm475, %v503, %v419
    %v505 = vsel %vm477, %v504, %v423
    %v506 = vsel %vm479, %v505, %v427
    %v507 = vsel %vm481, %v506, %v431
    %v508 = vsel %vm483, %v507, %v435
    %v509 = vsel %vm485, %v508, %v439
    %v510 = vsel %vm487, %v509, %v443
    %v511 = vsel %vm489, %v510, %v447
    %v512 = vsel %vm491, %v511, %v451
    %v513 = vsel %vm493, %v512, %v455
    %v514 = vsel %vm495, %v513, %v459
    %v515 = vsel %vm497, %v514, %v463
    %v516 = vsel %vm499, %v515, %v467
    %v517 = vsel %vm501, %v516, %v471
    %v520 = vcombine.low %v502, %v517
    %v522 = vunpack.c.l.s4 1983009808
    %v523 = vunpack.c.0.s8 %v522
    %v524 = vlaneseq
    %v525 = vshrl.u32 %v524, 7
    %v526 = vsub.s32 %v523, %v525
    %v527 = vrot.slane %v520, %v526
    %529 = vst [vmem:[#allocation5] sm:$0xf] %v527
    // Predicated region
    $region10: #{tpu_custom_call.1} parent=1 // pred_check
      _
    $region11: #{tpu_custom_call.1} parent=1 // pred_check_branch
      %531 = sbr.rel (0) target = $region13
    $region12: #{tpu_custom_call.1} parent=1 // pred_region
      %s533 = ssub.s32 64, 64
      %534 = vsyncadd [#allocation4], %s533
      %s536 = sshll.u32 [#allocation5], 4
      %s537 = int_to_ptr.vmem [resolvable:$true] %s536
      %539 = dma.vmem_to_hbm [thread:$0]  %s537, 64, %s1, [#allocation4]
    $region13: #{tpu_custom_call.1} parent=1 // pred_fallthru
      _
    // Predicated region
    $region14: #{tpu_custom_call.1} parent=1 // pred_check
      _
    $region15: #{tpu_custom_call.1} parent=1 // pred_check_branch
      %541 = sbr.rel (0) target = $region17
    $region16: #{tpu_custom_call.1} parent=1 // pred_region
      %542 = dma.done [#allocation4], 64
    $region17: #{tpu_custom_call.1} parent=1 // pred_fallthru
      _
    %543 = vsyncpa [#allocation3], 1
    %544 = vsyncpa [#allocation4], 1

</llo_original>
